<compile_context>
chip_gen: v7x
topology: tpu7x:2x2x1
jax: 0.10.0
libtpu: 0.0.40
codegen_flags: <defaults>
</compile_context>

<pallas_src>
import functools

import jax
import jax.numpy as jnp
from jax.experimental import pallas as pl
from jax.experimental.pallas import tpu as pltpu


def _round_up(n: int, m: int) -> int:
    return pl.cdiv(n, m) * m


def feedforward_kernel(xT_ref, w1_ref, b1_ref, w2_ref, b2_ref, o_ref):
    # xT_ref: (Dp, TB)  bf16  -- x^T tile, batch on the lane axis
    # w1_ref: (Hp, Dp)  bf16  -- fc1 weight in torch (out, in) layout, VMEM-resident
    # b1_ref: (Hp, 1)   f32   -- resident
    # w2_ref: (Hp, 1)   f32   -- fc2 weight as a column, resident
    # b2_ref: (1, 1)    f32   -- SMEM scalar
    # o_ref : (1, TB)   f32   -- lane-dense output row
    hidden = jnp.dot(w1_ref[...], xT_ref[...],
                     preferred_element_type=jnp.float32)          # (Hp, TB) MXU, f32 acc
    hidden = jnp.maximum(hidden + b1_ref[...], 0.0)               # bias + ReLU (VPU, f32)
    # fc2 with N=1: VPU multiply + XLU sublane reduce instead of a 1-column matmul.
    logit = jnp.sum(hidden * w2_ref[...], axis=0, keepdims=True)  # (1, TB)
    logit = logit + b2_ref[0, 0]
    # sigmoid(z) = 1 / (1 + exp(-z)); exp and approximate reciprocal both run on the EUP.
    o_ref[...] = pl.reciprocal(1.0 + jnp.exp(-logit), approx=True).astype(o_ref.dtype)


@functools.partial(jax.jit, static_argnames=("block_b",))
def feedforward(x, w1, b1, w2, b2, *, block_b=256):
    """Forward pass matching torch: sigmoid(relu(x @ w1.T + b1) @ w2.T + b2).

    x:  (B, D_in) f32
    w1: (H, D_in) f32   (torch fc1.weight layout)
    b1: (H,)      f32
    w2: (1, H)    f32   (torch fc2.weight layout)
    b2: (1,)      f32
    returns (B, 1) f32
    """
    assert block_b % 128 == 0, "batch tile must be a multiple of 128 lanes"
    B, D = x.shape
    H = w1.shape[0]

    Dp = _round_up(D, 128)                      # lane-align the contraction dim
    Hp = _round_up(H, 128)                      # align the hidden dim
    TB = min(block_b, _round_up(B, 128))        # batch tile (lane axis) >= 128
    B_pad = _round_up(B, TB)
    num_tiles = B_pad // TB

    # Wrapper-side layout plumbing (zero padding keeps the math exact). Cast to
    # bf16 before the transpose so the transpose moves half the bytes.
    x_t = jnp.pad(x.astype(jnp.bfloat16), ((0, B_pad - B), (0, Dp - D))).T   # (Dp, B_pad)
    w1_p = jnp.pad(w1, ((0, Hp - H), (0, Dp - D))).astype(jnp.bfloat16)      # (Hp, Dp)
    b1_c = jnp.pad(b1, (0, Hp - H)).reshape(Hp, 1).astype(jnp.float32)       # (Hp, 1)
    w2_c = jnp.pad(w2.T, ((0, Hp - H), (0, 0))).astype(jnp.float32)          # (Hp, 1)
    b2_s = b2.reshape(1, 1).astype(jnp.float32)                              # (1, 1) -> SMEM

    out = pl.pallas_call(
        feedforward_kernel,
        out_shape=jax.ShapeDtypeStruct((1, B_pad), jnp.float32),
        grid_spec=pltpu.PrefetchScalarGridSpec(
            num_scalar_prefetch=0,
            grid=(num_tiles,),
            in_specs=[
                pl.BlockSpec((Dp, TB), lambda i: (0, i)),      # x^T: new batch tile per step
                pl.BlockSpec((Hp, Dp), lambda i: (0, 0)),      # W1: resident (no re-DMA)
                pl.BlockSpec((Hp, 1), lambda i: (0, 0)),       # b1: resident
                pl.BlockSpec((Hp, 1), lambda i: (0, 0)),       # w2 column: resident
                pl.BlockSpec(memory_space=pltpu.MemorySpace.SMEM),  # b2 scalar
            ],
            out_specs=pl.BlockSpec((1, TB), lambda i: (0, i)),
        ),
        compiler_params=pltpu.CompilerParams(
            # Batch tiles are independent -> shard across TensorCores on v7x.
            dimension_semantics=("parallel",),
            # Working set is tiny (<1 MiB at these shapes); default scoped VMEM is
            # ample on v5e/v6e/v7x. For large D_in/H: add a K (D_in) reduction grid
            # axis with an f32 VMEM accumulator (init/finalize under pl.when) and
            # raise vmem_limit_bytes per generation (64 MiB physical cap on v7x).
        ),
    )(x_t, w1_p, b1_c, w2_c, b2_s)

    return out[0, :B][:, None]


def _reference(x, w1, b1, w2, b2):
    # Pure-JAX reference (torch Linear semantics: y = x @ W^T + b).
    hidden = jnp.maximum(x @ w1.T + b1, 0.0)
    return jax.nn.sigmoid(hidden @ w2.T + b2)


def init_params(key, input_size, hidden_size):
    """Deterministic init mimicking torch.nn.Linear (uniform +/- 1/sqrt(fan_in)),
    stored in torch's native (out_features, in_features) layout."""
    k1, k2, k3, k4 = jax.random.split(key, 4)
    bound1 = 1.0 / jnp.sqrt(input_size)
    bound2 = 1.0 / jnp.sqrt(hidden_size)
    w1 = jax.random.uniform(k1, (hidden_size, input_size), jnp.float32, -bound1, bound1)
    b1 = jax.random.uniform(k2, (hidden_size,), jnp.float32, -bound1, bound1)
    w2 = jax.random.uniform(k3, (1, hidden_size), jnp.float32, -bound2, bound2)
    b2 = jax.random.uniform(k4, (1,), jnp.float32, -bound2, bound2)
    return w1, b1, w2, b2


if __name__ == "__main__":
    key = jax.random.PRNGKey(0)

    # Primary small-shape check (matches the module's typical toy usage).
    batch, input_size, hidden_size = 8, 16, 32
    kx, kp, key = jax.random.split(key, 3)
    x = jax.random.normal(kx, (batch, input_size), jnp.float32)
    w1, b1, w2, b2 = init_params(kp, input_size, hidden_size)

    out = jax.block_until_ready(feedforward(x, w1, b1, w2, b2))
    ref = _reference(x, w1, b1, w2, b2)
    assert out.shape == (batch, 1)
    # bf16 MXU operands + approx EUP reciprocal -> slightly looser tolerance than pure f32.
    assert jnp.allclose(out, ref, atol=2e-2), "mismatch vs reference (small shape)"

    # Secondary check: unaligned dims + multiple batch tiles exercise the padding
    # and the grid pipeline (num_tiles > 1).
    batch2, input_size2, hidden_size2 = 300, 48, 100
    kx2, kp2 = jax.random.split(key)
    x2 = jax.random.normal(kx2, (batch2, input_size2), jnp.float32)
    w1b, b1b, w2b, b2b = init_params(kp2, input_size2, hidden_size2)

    out2 = jax.block_until_ready(feedforward(x2, w1b, b1b, w2b, b2b, block_b=128))
    ref2 = _reference(x2, w1b, b1b, w2b, b2b)
    assert out2.shape == (batch2, 1)
    assert jnp.allclose(out2, ref2, atol=2e-2), "mismatch vs reference (multi-tile)"

    print("KERNEL_OK")
</pallas_src>

<mosaic_0001>
module attributes {stable_mosaic.version = 11 : i64} {
  func.func @feedforward_kernel(%arg0: i32, %arg1: memref<128x128xbf16, #tpu.memory_space<vmem>>, %arg2: memref<128x128xbf16, #tpu.memory_space<vmem>>, %arg3: memref<128x1xf32, #tpu.memory_space<vmem>>, %arg4: memref<128x1xf32, #tpu.memory_space<vmem>>, %arg5: memref<1x1xf32, #tpu.memory_space<smem>>, %arg6: memref<1x128xf32, #tpu.memory_space<vmem>>) attributes {dimension_semantics = [#tpu.dimension_semantics<parallel>], iteration_bounds = array<i64: 1>, scalar_prefetch = 0 : i64, scratch_operands = 0 : i64, tpu.core_type = #tpu.core_type<tc>, window_params = [{transform_indices = @transform_0, window_bounds = array<i64: 128, 128>}, {pipeline_mode = #tpu.pipeline_mode<synchronous>, transform_indices = @transform_1, window_bounds = array<i64: 128, 128>}, {pipeline_mode = #tpu.pipeline_mode<synchronous>, transform_indices = @transform_2, window_bounds = array<i64: 128, 1>}, {pipeline_mode = #tpu.pipeline_mode<synchronous>, transform_indices = @transform_3, window_bounds = array<i64: 128, 1>}, {transform_indices = @transform_4, window_bounds = array<i64: 1, 1>}, {transform_indices = @transform_5, window_bounds = array<i64: 1, 128>}]} {
    %c0 = arith.constant 0 : index
    %c0_0 = arith.constant 0 : index
    %0 = vector.load %arg2[%c0, %c0_0] : memref<128x128xbf16, #tpu.memory_space<vmem>>, vector<128x128xbf16>
    %c0_1 = arith.constant 0 : index
    %c0_2 = arith.constant 0 : index
    %1 = vector.load %arg1[%c0_1, %c0_2] : memref<128x128xbf16, #tpu.memory_space<vmem>>, vector<128x128xbf16>
    %cst = arith.constant dense<0.000000e+00> : vector<128x128xf32>
    %2 = tpu.matmul %0, %1, %cst {dimension_numbers = #tpu.dot_dimension_numbers<[1], [0], [0], [1], [0, 0, 1, 1], [], []>} : vector<128x128xbf16>, vector<128x128xbf16>, vector<128x128xf32> -> vector<128x128xf32>
    %c0_3 = arith.constant 0 : index
    %c0_4 = arith.constant 0 : index
    %3 = vector.load %arg3[%c0_3, %c0_4] : memref<128x1xf32, #tpu.memory_space<vmem>>, vector<128x1xf32>
    %4 = vector.broadcast %3 : vector<128x1xf32> to vector<128x128xf32>
    %5 = arith.addf %2, %4 : vector<128x128xf32>
    %cst_5 = arith.constant 0.000000e+00 : f32
    %6 = vector.broadcast %cst_5 : f32 to vector<128x128xf32>
    %7 = arith.maximumf %5, %6 : vector<128x128xf32>
    %c0_6 = arith.constant 0 : index
    %c0_7 = arith.constant 0 : index
    %8 = vector.load %arg4[%c0_6, %c0_7] : memref<128x1xf32, #tpu.memory_space<vmem>>, vector<128x1xf32>
    %9 = vector.broadcast %8 : vector<128x1xf32> to vector<128x128xf32>
    %10 = arith.mulf %7, %9 : vector<128x128xf32>
    %cst_8 = arith.constant dense<0.000000e+00> : vector<128xf32>
    %11 = vector.multi_reduction <add>, %10, %cst_8 [0] : vector<128x128xf32> to vector<128xf32>
    %12 = vector.shape_cast %11 : vector<128xf32> to vector<1x128xf32>
    %c0_9 = arith.constant 0 : index
    %c0_10 = arith.constant 0 : index
    %13 = memref.load %arg5[%c0_9, %c0_10] : memref<1x1xf32, #tpu.memory_space<smem>>
    %14 = vector.broadcast %13 : f32 to vector<1x128xf32>
    %15 = arith.addf %12, %14 : vector<1x128xf32>
    %cst_11 = arith.constant 0.000000e+00 : f32
    %16 = vector.broadcast %cst_11 : f32 to vector<1x128xf32>
    %17 = arith.subf %16, %15 : vector<1x128xf32>
    %18 = math.exp %17 : vector<1x128xf32>
    %cst_12 = arith.constant 1.000000e+00 : f32
    %19 = vector.broadcast %cst_12 : f32 to vector<1x128xf32>
    %20 = arith.addf %19, %18 : vector<1x128xf32>
    %21 = tpu.reciprocal %20 {approx = true} : vector<1x128xf32> -> vector<1x128xf32>
    %c0_13 = arith.constant 0 : index
    %c0_14 = arith.constant 0 : index
    %22 = vector.load %arg6[%c0_13, %c0_14] : memref<1x128xf32, #tpu.memory_space<vmem>>, vector<1x128xf32>
    tpu.vector_store %arg6[%c0_13, %c0_14], %21 {strides = array<i32>} : memref<1x128xf32, #tpu.memory_space<vmem>>, vector<1x128xf32>,
    return
  }
  func.func @transform_0(%arg0: i32) -> (i32, i32) {
    %c0_i32 = arith.constant 0 : i32
    %c0_i32_0 = arith.constant 0 : i32
    return %c0_i32, %arg0 : i32, i32
  }
  func.func @transform_1(%arg0: i32) -> (i32, i32) {
    %c0_i32 = arith.constant 0 : i32
    %c0_i32_0 = arith.constant 0 : i32
    %c0_i32_1 = arith.constant 0 : i32
    return %c0_i32, %c0_i32_0 : i32, i32
  }
  func.func @transform_2(%arg0: i32) -> (i32, i32) {
    %c0_i32 = arith.constant 0 : i32
    %c0_i32_0 = arith.constant 0 : i32
    %c0_i32_1 = arith.constant 0 : i32
    return %c0_i32, %c0_i32_0 : i32, i32
  }
  func.func @transform_3(%arg0: i32) -> (i32, i32) {
    %c0_i32 = arith.constant 0 : i32
    %c0_i32_0 = arith.constant 0 : i32
    %c0_i32_1 = arith.constant 0 : i32
    return %c0_i32, %c0_i32_0 : i32, i32
  }
  func.func @transform_4(%arg0: i32) -> (i32, i32) {
    %c0_i32 = arith.constant 0 : i32
    %c0_i32_0 = arith.constant 0 : i32
    %c0_i32_1 = arith.constant 0 : i32
    return %c0_i32, %c0_i32_0 : i32, i32
  }
  func.func @transform_5(%arg0: i32) -> (i32, i32) {
    %c0_i32 = arith.constant 0 : i32
    %c0_i32_0 = arith.constant 0 : i32
    return %c0_i32, %arg0 : i32, i32
  }
}

</mosaic_0001>

<llo_original>
// kernel: feedforward.1
$region0: #{feedforward.1}
  #allocation0 [shape = 'u32[]', space=smem, size = 0x4, offset = 0x4, fixed_abs, tag = 'smem constant byte address 0x4 - core index']
  #allocation1 [shape = 'u32[144,128]{1,0:T(1,128)}', space=vmem, size = 0x12000, scoped, tag = 'internal scratch']
  #allocation2 [shape = 'f32[1,1]{1,0:T(1,128)S(6)}', space=smem, size = 0x200, scoped, tag = 'scoped memory for feedforward.1']
  %s0 = inlined_call_operand.vmem [shape: bf16[128,128], index: 0, kind: input, shape index: {}]
  %s1 = inlined_call_operand.vmem [shape: bf16[128,128], index: 1, kind: input, shape index: {}]
  %s2 = inlined_call_operand.vmem [shape: f32[128,1], index: 2, kind: input, shape index: {}]
  %s3 = inlined_call_operand.vmem [shape: f32[128,1], index: 3, kind: input, shape index: {}]
  %s4 = inlined_call_operand.<no memory space> [shape: f32[1,1], index: 4, kind: input, shape index: {}]
  %s5 = inlined_call_operand.vmem [shape: f32[1,128], index: 5, kind: output, shape index: {}]
  %s6 = sld [smem:[#allocation0]]
  $region30: #{feedforward.1} parent=0
    _
  %s8 = ssub.s32 1, %s6
  %s9 = scalar_select 0, %s8, %s6
  %10 = sst [smem:[#allocation2]] %s4
  // Predicated region
  $region2: #{feedforward.1} parent=0 // pred_check
    _
  $region3: #{feedforward.1} parent=0 // pred_check_branch
    %12 = sbr.rel (0) target = $region5
  $region4: #{feedforward.1} parent=0 // pred_region
    _
  $region5: #{feedforward.1} parent=0 // pred_fallthru
    _
  // Predicated region
  $region6: #{feedforward.1} parent=0 // pred_check
    _
  $region7: #{feedforward.1} parent=0 // pred_check_branch
    %14 = sbr.rel (0) target = $region9
  $region8: #{feedforward.1} parent=0 // pred_region
    _
  $region9: #{feedforward.1} parent=0 // pred_fallthru
    _
  // Predicated region
  $region10: #{feedforward.1} parent=0 // pred_check
    _
  $region11: #{feedforward.1} parent=0 // pred_check_branch
    %16 = sbr.rel (0) target = $region13
  $region12: #{feedforward.1} parent=0 // pred_region
    _
  $region13: #{feedforward.1} parent=0 // pred_fallthru
    _
  // Predicated region
  $region14: #{feedforward.1} parent=0 // pred_check
    _
  $region15: #{feedforward.1} parent=0 // pred_check_branch
    %18 = sbr.rel (0) target = $region17
  $region16: #{feedforward.1} parent=0 // pred_region
    _
  $region17: #{feedforward.1} parent=0 // pred_fallthru
    _
  // Predicated region
  $region18: #{feedforward.1} parent=0 // pred_check
    _
  $region19: #{feedforward.1} parent=0 // pred_check_branch
    %20 = sbr.rel (0) target = $region21
  $region20: #{feedforward.1} parent=0 // pred_region
    _
  $region21: #{feedforward.1} parent=0 // pred_fallthru
    _
  %v22 = vld [vmem:[%s1] sm:$0xf]
  %v23 = vld [vmem:[%s1 + $0x4] sm:$0xf]
  %v24 = vld [vmem:[%s1 + $0x8] sm:$0xf]
  %v25 = vld [vmem:[%s1 + $0xc] sm:$0xf]
  %v26 = vld [vmem:[%s1 + $0x10] sm:$0xf]
  %v27 = vld [vmem:[%s1 + $0x14] sm:$0xf]
  %v28 = vld [vmem:[%s1 + $0x18] sm:$0xf]
  %v29 = vld [vmem:[%s1 + $0x1c] sm:$0xf]
  %v30 = vld [vmem:[%s1 + $0x20] sm:$0xf]
  %v31 = vld [vmem:[%s1 + $0x24] sm:$0xf]
  %v32 = vld [vmem:[%s1 + $0x28] sm:$0xf]
  %v33 = vld [vmem:[%s1 + $0x2c] sm:$0xf]
  %v34 = vld [vmem:[%s1 + $0x30] sm:$0xf]
  %v35 = vld [vmem:[%s1 + $0x34] sm:$0xf]
  %v36 = vld [vmem:[%s1 + $0x38] sm:$0xf]
  %v37 = vld [vmem:[%s1 + $0x3c] sm:$0xf]
  %v38 = vld [vmem:[%s0] sm:$0xf]
  %v39 = vld [vmem:[%s0 + $0x4] sm:$0xf]
  %v40 = vld [vmem:[%s0 + $0x8] sm:$0xf]
  %v41 = vld [vmem:[%s0 + $0xc] sm:$0xf]
  %v42 = vld [vmem:[%s0 + $0x10] sm:$0xf]
  %v43 = vld [vmem:[%s0 + $0x14] sm:$0xf]
  %v44 = vld [vmem:[%s0 + $0x18] sm:$0xf]
  %v45 = vld [vmem:[%s0 + $0x1c] sm:$0xf]
  %v46 = vld [vmem:[%s0 + $0x20] sm:$0xf]
  %v47 = vld [vmem:[%s0 + $0x24] sm:$0xf]
  %v48 = vld [vmem:[%s0 + $0x28] sm:$0xf]
  %v49 = vld [vmem:[%s0 + $0x2c] sm:$0xf]
  %v50 = vld [vmem:[%s0 + $0x30] sm:$0xf]
  %v51 = vld [vmem:[%s0 + $0x34] sm:$0xf]
  %v52 = vld [vmem:[%s0 + $0x38] sm:$0xf]
  %v53 = vld [vmem:[%s0 + $0x3c] sm:$0xf]
  %v54 = vld [vmem:[%s2] sm:$0xff]
  %v55 = vld [vmem:[%s2 + $0x8] sm:$0xff]
  %v56 = vld [vmem:[%s2 + $0x10] sm:$0xff]
  %v57 = vld [vmem:[%s2 + $0x18] sm:$0xff]
  %v58 = vld [vmem:[%s2 + $0x20] sm:$0xff]
  %v59 = vld [vmem:[%s2 + $0x28] sm:$0xff]
  %v60 = vld [vmem:[%s2 + $0x30] sm:$0xff]
  %v61 = vld [vmem:[%s2 + $0x38] sm:$0xff]
  %v62 = vld [vmem:[%s2 + $0x40] sm:$0xff]
  %v63 = vld [vmem:[%s2 + $0x48] sm:$0xff]
  %v64 = vld [vmem:[%s2 + $0x50] sm:$0xff]
  %v65 = vld [vmem:[%s2 + $0x58] sm:$0xff]
  %v66 = vld [vmem:[%s2 + $0x60] sm:$0xff]
  %v67 = vld [vmem:[%s2 + $0x68] sm:$0xff]
  %v68 = vld [vmem:[%s2 + $0x70] sm:$0xff]
  %v69 = vld [vmem:[%s2 + $0x78] sm:$0xff]
  %71 = vset.pattern.permute.xlu0 0
  %72 = vperm.xlu0 %71, %v54
  %v73 = vpop.permute.xlu0 %72
  %76 = vset.pattern.permute.xlu0 0
  %77 = vperm.xlu0 %76, %v55
  %v78 = vpop.permute.xlu0 %77
  %81 = vset.pattern.permute.xlu0 0
  %82 = vperm.xlu0 %81, %v56
  %v83 = vpop.permute.xlu0 %82
  %86 = vset.pattern.permute.xlu0 0
  %87 = vperm.xlu0 %86, %v57
  %v88 = vpop.permute.xlu0 %87
  %91 = vset.pattern.permute.xlu0 0
  %92 = vperm.xlu0 %91, %v58
  %v93 = vpop.permute.xlu0 %92
  %96 = vset.pattern.permute.xlu0 0
  %97 = vperm.xlu0 %96, %v59
  %v98 = vpop.permute.xlu0 %97
  %101 = vset.pattern.permute.xlu0 0
  %102 = vperm.xlu0 %101, %v60
  %v103 = vpop.permute.xlu0 %102
  %106 = vset.pattern.permute.xlu0 0
  %107 = vperm.xlu0 %106, %v61
  %v108 = vpop.permute.xlu0 %107
  %111 = vset.pattern.permute.xlu0 0
  %112 = vperm.xlu0 %111, %v62
  %v113 = vpop.permute.xlu0 %112
  %116 = vset.pattern.permute.xlu0 0
  %117 = vperm.xlu0 %116, %v63
  %v118 = vpop.permute.xlu0 %117
  %121 = vset.pattern.permute.xlu0 0
  %122 = vperm.xlu0 %121, %v64
  %v123 = vpop.permute.xlu0 %122
  %126 = vset.pattern.permute.xlu0 0
  %127 = vperm.xlu0 %126, %v65
  %v128 = vpop.permute.xlu0 %127
  %131 = vset.pattern.permute.xlu0 0
  %132 = vperm.xlu0 %131, %v66
  %v133 = vpop.permute.xlu0 %132
  %136 = vset.pattern.permute.xlu0 0
  %137 = vperm.xlu0 %136, %v67
  %v138 = vpop.permute.xlu0 %137
  %141 = vset.pattern.permute.xlu0 0
  %142 = vperm.xlu0 %141, %v68
  %v143 = vpop.permute.xlu0 %142
  %146 = vset.pattern.permute.xlu0 0
  %147 = vperm.xlu0 %146, %v69
  %v148 = vpop.permute.xlu0 %147
  %v166 = vunpack.c.l.b16 %v22
  %v167 = vunpack.c.l.b16 %v23
  %v168 = vunpack.c.l.b16 %v24
  %v169 = vunpack.c.l.b16 %v25
  %v170 = vunpack.c.l.b16 %v26
  %v171 = vunpack.c.l.b16 %v27
  %v172 = vunpack.c.l.b16 %v28
  %v173 = vunpack.c.l.b16 %v29
  %v174 = vunpack.c.l.b16 %v30
  %v175 = vunpack.c.l.b16 %v31
  %v176 = vunpack.c.l.b16 %v32
  %v177 = vunpack.c.l.b16 %v33
  %v178 = vunpack.c.l.b16 %v34
  %v179 = vunpack.c.l.b16 %v35
  %v180 = vunpack.c.l.b16 %v36
  %v181 = vunpack.c.l.b16 %v37
  %v182 = vpack.c.b16 %v167, %v166
  %v183 = vpack.c.b16 %v169, %v168
  %v184 = vpack.c.b16 %v171, %v170
  %v185 = vpack.c.b16 %v173, %v172
  %v186 = vpack.c.b16 %v175, %v174
  %v187 = vpack.c.b16 %v177, %v176
  %v188 = vpack.c.b16 %v179, %v178
  %v189 = vpack.c.b16 %v181, %v180
  %v214 = vunpack.c.l.b16 %v38
  %v215 = vunpack.c.l.b16 %v39
  %v216 = vunpack.c.l.b16 %v40
  %v217 = vunpack.c.l.b16 %v41
  %v218 = vunpack.c.l.b16 %v42
  %v219 = vunpack.c.l.b16 %v43
  %v220 = vunpack.c.l.b16 %v44
  %v221 = vunpack.c.l.b16 %v45
  %v222 = vunpack.c.l.b16 %v46
  %v223 = vunpack.c.l.b16 %v47
  %v224 = vunpack.c.l.b16 %v48
  %v225 = vunpack.c.l.b16 %v49
  %v226 = vunpack.c.l.b16 %v50
  %v227 = vunpack.c.l.b16 %v51
  %v228 = vunpack.c.l.b16 %v52
  %v229 = vunpack.c.l.b16 %v53
  %v230 = vpack.c.b16 %v215, %v214
  %v231 = vpack.c.b16 %v217, %v216
  %v232 = vpack.c.b16 %v219, %v218
  %v233 = vpack.c.b16 %v221, %v220
  %v234 = vpack.c.b16 %v223, %v222
  %v235 = vpack.c.b16 %v225, %v224
  %v236 = vpack.c.b16 %v227, %v226
  %v237 = vpack.c.b16 %v229, %v228
  %246 = vmatprep.subr.bf16.mxu0 0
  %247 = vmatpush1.bf16.msra.mxu0 %v230
  %248 = vmatprep.subr.bf16.mxu0 0
  %249 = vmatpush1.bf16.msra.mxu0 %v231
  %250 = vmatprep.subr.bf16.mxu0 0
  %251 = vmatpush1.bf16.msra.mxu0 %v232
  %252 = vmatprep.subr.bf16.mxu0 0
  %253 = vmatpush1.bf16.msra.mxu0 %v233
  %254 = vmatprep.subr.bf16.mxu0 0
  %255 = vmatpush1.bf16.msra.mxu0 %v234
  %256 = vmatprep.subr.bf16.mxu0 0
  %257 = vmatpush1.bf16.msra.mxu0 %v235
  %258 = vmatprep.subr.bf16.mxu0 0
  %259 = vmatpush1.bf16.msra.mxu0 %v236
  %260 = vmatprep.subr.bf16.mxu0 0
  %261 = vmatpush1.bf16.msra.mxu0 %v237
  %262 = vmatprep.subr.bf16.mxu0 0
  %263 = vmatpush1.bf16.msra.mxu0 0
  %264 = vmatprep.subr.bf16.mxu0 0
  %265 = vmatpush1.bf16.msra.mxu0 0
  %266 = vmatprep.subr.bf16.mxu0 0
  %267 = vmatpush1.bf16.msra.mxu0 0
  %268 = vmatprep.subr.bf16.mxu0 0
  %269 = vmatpush1.bf16.msra.mxu0 0
  %270 = vmatprep.subr.bf16.mxu0 0
  %271 = vmatpush1.bf16.msra.mxu0 0
  %272 = vmatprep.subr.bf16.mxu0 0
  %273 = vmatpush1.bf16.msra.mxu0 0
  %274 = vmatprep.subr.bf16.mxu0 0
  %275 = vmatpush1.bf16.msra.mxu0 0
  %276 = vmatprep.subr.bf16.mxu0 0
  %277 = vmatpush1.bf16.msra.mxu0 0
  %278 = vmatprep.mubr.bf16.mxu0 0
  %279 = vmatmul.mubr.bf16.gmra.mrb[0].mxu0 %v182
  %v280 = vpop.f32.mrb[0].mxu0
  %v281 = vadd.f32 %v73, %v280
  %v282 = vpop.f32.mrb[0].mxu0
  %v283 = vpop.f32.mrb[0].mxu0
  %v284 = vadd.f32 %v78, %v283
  %v285 = vpop.f32.mrb[0].mxu0
  %286 = vmatprep.mubr.bf16.mxu0 0
  %287 = vmatmul.mubr.bf16.gmra.mrb[0].mxu0 %v183
  %v288 = vpop.f32.mrb[0].mxu0
  %v289 = vadd.f32 %v83, %v288
  %v290 = vpop.f32.mrb[0].mxu0
  %v291 = vpop.f32.mrb[0].mxu0
  %v292 = vadd.f32 %v88, %v291
  %v293 = vpop.f32.mrb[0].mxu0
  %294 = vmatprep.mubr.bf16.mxu0 0
  %295 = vmatmul.mubr.bf16.gmra.mrb[0].mxu0 %v184
  %v296 = vpop.f32.mrb[0].mxu0
  %v297 = vadd.f32 %v93, %v296
  %v298 = vpop.f32.mrb[0].mxu0
  %v299 = vpop.f32.mrb[0].mxu0
  %v300 = vadd.f32 %v98, %v299
  %v301 = vpop.f32.mrb[0].mxu0
  %302 = vmatprep.mubr.bf16.mxu0 0
  %303 = vmatmul.mubr.bf16.gmra.mrb[0].mxu0 %v185
  %v304 = vpop.f32.mrb[0].mxu0
  %v305 = vadd.f32 %v103, %v304
  %v306 = vpop.f32.mrb[0].mxu0
  %v307 = vpop.f32.mrb[0].mxu0
  %v308 = vadd.f32 %v108, %v307
  %v309 = vpop.f32.mrb[0].mxu0
  %310 = vmatprep.mubr.bf16.mxu0 0
  %311 = vmatmul.mubr.bf16.gmra.mrb[0].mxu0 %v186
  %v312 = vpop.f32.mrb[0].mxu0
  %v313 = vadd.f32 %v113, %v312
  %v314 = vpop.f32.mrb[0].mxu0
  %v315 = vpop.f32.mrb[0].mxu0
  %v316 = vadd.f32 %v118, %v315
  %v317 = vpop.f32.mrb[0].mxu0
  %318 = vmatprep.mubr.bf16.mxu0 0
  %319 = vmatmul.mubr.bf16.gmra.mrb[0].mxu0 %v187
  %v320 = vpop.f32.mrb[0].mxu0
  %v321 = vadd.f32 %v123, %v320
  %v322 = vpop.f32.mrb[0].mxu0
  %v323 = vpop.f32.mrb[0].mxu0
  %v324 = vadd.f32 %v128, %v323
  %v325 = vpop.f32.mrb[0].mxu0
  %326 = vmatprep.mubr.bf16.mxu0 0
  %327 = vmatmul.mubr.bf16.gmra.mrb[0].mxu0 %v188
  %v328 = vpop.f32.mrb[0].mxu0
  %v329 = vadd.f32 %v133, %v328
  %v330 = vpop.f32.mrb[0].mxu0
  %v331 = vpop.f32.mrb[0].mxu0
  %v332 = vadd.f32 %v138, %v331
  %v333 = vpop.f32.mrb[0].mxu0
  %334 = vmatprep.mubr.bf16.mxu0 0
  %335 = vmatmul.mubr.bf16.gmra.mrb[0].mxu0 %v189
  %v336 = vpop.f32.mrb[0].mxu0
  %v337 = vadd.f32 %v143, %v336
  %v338 = vpop.f32.mrb[0].mxu0
  %v339 = vpop.f32.mrb[0].mxu0
  %v340 = vadd.f32 %v148, %v339
  %v341 = vpop.f32.mrb[0].mxu0
  %342 = vdwg.mxu0
  %v343 = vmax.f32 %v281, 0.0
  %v344 = vmax.f32 %v284, 0.0
  %v345 = vmax.f32 %v289, 0.0
  %v346 = vmax.f32 %v292, 0.0
  %v347 = vmax.f32 %v297, 0.0
  %v348 = vmax.f32 %v300, 0.0
  %v349 = vmax.f32 %v305, 0.0
  %v350 = vmax.f32 %v308, 0.0
  %v351 = vmax.f32 %v313, 0.0
  %v352 = vmax.f32 %v316, 0.0
  %v353 = vmax.f32 %v321, 0.0
  %v354 = vmax.f32 %v324, 0.0
  %v355 = vmax.f32 %v329, 0.0
  %v356 = vmax.f32 %v332, 0.0
  %v357 = vmax.f32 %v337, 0.0
  %v358 = vmax.f32 %v340, 0.0
  %v359 = vld [vmem:[%s3] sm:$0xff]
  %v360 = vld [vmem:[%s3 + $0x8] sm:$0xff]
  %v361 = vld [vmem:[%s3 + $0x10] sm:$0xff]
  %v362 = vld [vmem:[%s3 + $0x18] sm:$0xff]
  %v363 = vld [vmem:[%s3 + $0x20] sm:$0xff]
  %v364 = vld [vmem:[%s3 + $0x28] sm:$0xff]
  %v365 = vld [vmem:[%s3 + $0x30] sm:$0xff]
  %v366 = vld [vmem:[%s3 + $0x38] sm:$0xff]
  %v367 = vld [vmem:[%s3 + $0x40] sm:$0xff]
  %v368 = vld [vmem:[%s3 + $0x48] sm:$0xff]
  %v369 = vld [vmem:[%s3 + $0x50] sm:$0xff]
  %v370 = vld [vmem:[%s3 + $0x58] sm:$0xff]
  %v371 = vld [vmem:[%s3 + $0x60] sm:$0xff]
  %v372 = vld [vmem:[%s3 + $0x68] sm:$0xff]
  %v373 = vld [vmem:[%s3 + $0x70] sm:$0xff]
  %v374 = vld [vmem:[%s3 + $0x78] sm:$0xff]
  %376 = vset.pattern.permute.xlu0 0
  %377 = vperm.xlu0 %376, %v359
  %v378 = vpop.permute.xlu0 %377
  %381 = vset.pattern.permute.xlu0 0
  %382 = vperm.xlu0 %381, %v360
  %v383 = vpop.permute.xlu0 %382
  %386 = vset.pattern.permute.xlu0 0
  %387 = vperm.xlu0 %386, %v361
  %v388 = vpop.permute.xlu0 %387
  %391 = vset.pattern.permute.xlu0 0
  %392 = vperm.xlu0 %391, %v362
  %v393 = vpop.permute.xlu0 %392
  %396 = vset.pattern.permute.xlu0 0
  %397 = vperm.xlu0 %396, %v363
  %v398 = vpop.permute.xlu0 %397
  %401 = vset.pattern.permute.xlu0 0
  %402 = vperm.xlu0 %401, %v364
  %v403 = vpop.permute.xlu0 %402
  %406 = vset.pattern.permute.xlu0 0
  %407 = vperm.xlu0 %406, %v365
  %v408 = vpop.permute.xlu0 %407
  %411 = vset.pattern.permute.xlu0 0
  %412 = vperm.xlu0 %411, %v366
  %v413 = vpop.permute.xlu0 %412
  %416 = vset.pattern.permute.xlu0 0
  %417 = vperm.xlu0 %416, %v367
  %v418 = vpop.permute.xlu0 %417
  %421 = vset.pattern.permute.xlu0 0
  %422 = vperm.xlu0 %421, %v368
  %v423 = vpop.permute.xlu0 %422
  %426 = vset.pattern.permute.xlu0 0
  %427 = vperm.xlu0 %426, %v369
  %v428 = vpop.permute.xlu0 %427
  %431 = vset.pattern.permute.xlu0 0
  %432 = vperm.xlu0 %431, %v370
  %v433 = vpop.permute.xlu0 %432
  %436 = vset.pattern.permute.xlu0 0
  %437 = vperm.xlu0 %436, %v371
  %v438 = vpop.permute.xlu0 %437
  %441 = vset.pattern.permute.xlu0 0
  %442 = vperm.xlu0 %441, %v372
  %v443 = vpop.permute.xlu0 %442
  %446 = vset.pattern.permute.xlu0 0
  %447 = vperm.xlu0 %446, %v373
  %v448 = vpop.permute.xlu0 %447
  %451 = vset.pattern.permute.xlu0 0
  %452 = vperm.xlu0 %451, %v374
  %v453 = vpop.permute.xlu0 %452
  %v455 = vmul.f32 %v343, %v378
  %v456 = vmul.f32 %v344, %v383
  %v457 = vmul.f32 %v345, %v388
  %v458 = vmul.f32 %v346, %v393
  %v459 = vmul.f32 %v347, %v398
  %v460 = vmul.f32 %v348, %v403
  %v461 = vmul.f32 %v349, %v408
  %v462 = vmul.f32 %v350, %v413
  %v463 = vmul.f32 %v351, %v418
  %v464 = vmul.f32 %v352, %v423
  %v465 = vmul.f32 %v353, %v428
  %v466 = vmul.f32 %v354, %v433
  %v467 = vmul.f32 %v355, %v438
  %v468 = vmul.f32 %v356, %v443
  %v469 = vmul.f32 %v357, %v448
  %v470 = vmul.f32 %v358, %v453
  %v471 = vadd.f32 %v455, %v456
  %v472 = vadd.f32 %v471, %v457
  %v473 = vadd.f32 %v472, %v458
  %v474 = vadd.f32 %v473, %v459
  %v475 = vadd.f32 %v474, %v460
  %v476 = vadd.f32 %v475, %v461
  %v477 = vadd.f32 %v476, %v462
  %v478 = vadd.f32 %v477, %v463
  %v479 = vadd.f32 %v478, %v464
  %v480 = vadd.f32 %v479, %v465
  %v481 = vadd.f32 %v480, %v466
  %v482 = vadd.f32 %v481, %v467
  %v483 = vadd.f32 %v482, %v468
  %v484 = vadd.f32 %v483, %v469
  %v485 = vadd.f32 %v484, %v470
  %v486 = vrot.slane %v485, 4
  %v487 = vadd.f32 %v485, %v486
  %v488 = vrot.slane %v487, 2
  %v489 = vadd.f32 %v487, %v488
  %v490 = vrot.slane %v489, 1
  %v491 = vadd.f32 %v489, %v490
  %s492 = sld [smem:[#allocation2]]
  %v493 = vstv %s492
  %v494 = vadd.f32 %v491, %v493
  %v495 = vsub.f32 0.0, %v494
  %v496 = vmul.f32 %v495, 1.442695
  %v497 = vpow.pop %v496
  %v498 = vadd.f32 %v497, 1.0
  %v499 = vrcp.pop %v498
  %500 = vst [vmem:[%s5] sm:$0x1] %v499
  // Predicated region
  $region22: #{feedforward.1} parent=0 // pred_check
    _
  $region23: #{feedforward.1} parent=0 // pred_check_branch
    %502 = sbr.rel (0) target = $region25
  $region24: #{feedforward.1} parent=0 // pred_region
    _
  $region25: #{feedforward.1} parent=0 // pred_fallthru
    _
  // Predicated region
  $region26: #{feedforward.1} parent=0 // pred_check
    _
  $region27: #{feedforward.1} parent=0 // pred_check_branch
    %504 = sbr.rel (0) target = $region29
  $region28: #{feedforward.1} parent=0 // pred_region
    _
  $region29: #{feedforward.1} parent=0 // pred_fallthru
    _

</llo_original>
